<compile_context>
chip_gen: v5e
topology: v5e:2x2
jax: 0.10.0
libtpu: 0.0.40
codegen_flags: <defaults>
</compile_context>

<pallas_src>
import functools

import numpy as np
import jax
import jax.numpy as jnp
from jax import lax
from jax.experimental import pallas as pl
from jax.experimental.pallas import tpu as pltpu


# ---------------------------------------------------------------------------
# hardware-aware knobs
# ---------------------------------------------------------------------------
def _vmem_limit_bytes():
    cap = 0
    try:
        info = pltpu.get_tpu_info()
        cap = int(getattr(info, "vmem_capacity_bytes", 0) or 0)
    except Exception:
        cap = 0
    if cap <= 0:
        cap = 64 * 1024 * 1024            # conservative default (v7x physical VMEM)
    # leave headroom for compiler internal scratch / semaphores / pipelining bookkeeping
    return max(32 * 1024 * 1024, (cap * 3) // 4)


_VMEM_LIMIT = _vmem_limit_bytes()
_BIG_VMEM = _VMEM_LIMIT >= 80 * 1024 * 1024     # v5e / v6e (128 MiB)  vs  v7x (64 MiB)

_CompilerParams = getattr(pltpu, "CompilerParams", None)


def _compiler_params(dimension_semantics):
    if _CompilerParams is None:
        return None
    try:
        return _CompilerParams(dimension_semantics=dimension_semantics,
                               vmem_limit_bytes=_VMEM_LIMIT)
    except TypeError:  # very old signatures
        return _CompilerParams(dimension_semantics=dimension_semantics)


def _cost_estimate(flops, bytes_accessed, transcendentals=0):
    try:
        return pl.CostEstimate(flops=int(flops), transcendentals=int(transcendentals),
                               bytes_accessed=int(bytes_accessed))
    except Exception:  # pragma: no cover - older jax without CostEstimate
        return None


def _pick_tile(dim, preferred, align):
    """Largest tile <= preferred that is a multiple of `align` and divides `dim`,
    or the full dim (full-dim blocks always satisfy Mosaic layout rules)."""
    if dim <= preferred:
        return dim
    t = (preferred // align) * align
    while t >= align:
        if dim % t == 0:
            return t
        t -= align
    return dim


def _mm_tiles(M, K, N):
    # Generation-aware matmul tiles: 128 MiB VMEM parts afford 512-wide MXU-aligned tiles,
    # 64 MiB (v7x) keeps the M tile at 256.
    tm_pref = 512 if _BIG_VMEM else 256
    return (_pick_tile(M, tm_pref, 16),      # sublane dim of x / out (16: bf16 packing)
            _pick_tile(N, 512, 128),         # lane dim of w / out
            _pick_tile(K, 512, 128))         # lane dim of x, sublane dim of w


def _row_tile(S, row_elems, elem_bytes=4, pref_cap=512):
    """VMEM-aware row tile for HBM-bound row kernels (norms, qkv split+rope)."""
    budget = _VMEM_LIMIT // 6
    cap_rows = max(16, budget // max(1, row_elems * elem_bytes))
    pref = max(16, min(pref_cap, (cap_rows // 16) * 16))
    return _pick_tile(S, pref, 16)


def _reciprocal(x):
    fn = getattr(pl, "reciprocal", None)
    if fn is not None:
        return fn(x, approx=True)            # EUP slot
    return 1.0 / x


# ---------------------------------------------------------------------------
# Pallas kernels
# ---------------------------------------------------------------------------
def _rmsnorm_kernel(eps, x_ref, w_ref, o_ref):
    x = x_ref[...].astype(jnp.float32)
    var = jnp.mean(x * x, axis=-1, keepdims=True)
    o_ref[...] = (x * lax.rsqrt(var + eps) * w_ref[...].astype(jnp.float32)).astype(o_ref.dtype)


def _fused_add_rmsnorm_kernel(eps, x_ref, r_ref, w_ref, o_ref, rout_ref):
    s = x_ref[...].astype(jnp.float32) + r_ref[...].astype(jnp.float32)
    rout_ref[...] = s.astype(rout_ref.dtype)
    var = jnp.mean(s * s, axis=-1, keepdims=True)
    o_ref[...] = (s * lax.rsqrt(var + eps) * w_ref[...].astype(jnp.float32)).astype(o_ref.dtype)


def _matmul_kernel(x_ref, w_ref, o_ref, acc_ref):
    @pl.when(pl.program_id(2) == 0)
    def _init():
        acc_ref[...] = jnp.zeros_like(acc_ref)

    acc_ref[...] += jnp.dot(x_ref[...], w_ref[...], preferred_element_type=jnp.float32)

    @pl.when(pl.program_id(2) == pl.num_programs(2) - 1)
    def _store():
        o_ref[...] = acc_ref[...].astype(o_ref.dtype)


def _gate_up_silu_kernel(x_ref, wg_ref, wu_ref, o_ref, accg_ref, accu_ref):
    @pl.when(pl.program_id(2) == 0)
    def _init():
        accg_ref[...] = jnp.zeros_like(accg_ref)
        accu_ref[...] = jnp.zeros_like(accu_ref)

    x = x_ref[...]
    accg_ref[...] += jnp.dot(x, wg_ref[...], preferred_element_type=jnp.float32)
    accu_ref[...] += jnp.dot(x, wu_ref[...], preferred_element_type=jnp.float32)

    @pl.when(pl.program_id(2) == pl.num_programs(2) - 1)
    def _store():
        g = accg_ref[...]
        o_ref[...] = (g * jax.nn.sigmoid(g) * accu_ref[...]).astype(o_ref.dtype)


def _qkv_split_rope_kernel(H, KVH, D, qkv_ref, cos_ref, sin_ref, q_ref, k_ref, v_ref):
    """Split qkv columns, apply neox RoPE to q/k once, emit head-major [H, tm, D] layouts."""
    half = D // 2
    cos = cos_ref[...]                        # (tm, D) f32
    sin = sin_ref[...]                        # sign-folded sin

    def rope(x):                              # x: (tm, D) f32
        rot = jnp.concatenate([x[:, half:], x[:, :half]], axis=-1)
        return x * cos + rot * sin

    q_size = H * D
    kv_size = KVH * D
    for h in range(H):
        x = qkv_ref[:, h * D:(h + 1) * D].astype(jnp.float32)
        q_ref[h] = rope(x).astype(q_ref.dtype)
    for h in range(KVH):
        xk = qkv_ref[:, q_size + h * D:q_size + (h + 1) * D].astype(jnp.float32)
        k_ref[h] = rope(xk).astype(k_ref.dtype)
        v_ref[h] = qkv_ref[:, q_size + kv_size + h * D:q_size + kv_size + (h + 1) * D
                           ].astype(v_ref.dtype)


def _flash_attn_kernel(scale, rep, tq, tk, compute_dtype,
                       q_ref, k_ref, v_ref, o_ref, qs_sc, m_sc, l_sc, acc_sc):
    qi = pl.program_id(1)
    ki = pl.program_id(2)

    @pl.when(ki == 0)
    def _init():
        # Fold softmax scale into q and merge rep into the M dim; once per q tile.
        q = q_ref[...].astype(jnp.float32) * scale          # (rep, tq, D)
        qs_sc[...] = q.reshape(rep * tq, -1).astype(compute_dtype)
        m_sc[...] = jnp.full_like(m_sc, -1e30)
        l_sc[...] = jnp.zeros_like(l_sc)
        acc_sc[...] = jnp.zeros_like(acc_sc)

    # Skip kv tiles entirely in the causal future of this q tile (DMA already skipped
    # by the clamped index_map in the wrapper).
    @pl.when(qi * tq + (tq - 1) >= ki * tk)
    def _compute():
        qs = qs_sc[...]                                      # (rep*tq, D)
        k = k_ref[0].astype(compute_dtype)                   # (tk, D)
        v = v_ref[0].astype(compute_dtype)                   # (tk, D)
        # single MXU-shaped matmul: (rep*tq, D) x (tk, D)^T -> (rep*tq, tk)
        s = lax.dot_general(qs, k, (((1,), (1,)), ((), ())),
                            preferred_element_type=jnp.float32)

        q_pos = qi * tq + lax.broadcasted_iota(jnp.int32, (tq, tk), 0)
        k_pos = ki * tk + lax.broadcasted_iota(jnp.int32, (tq, tk), 1)
        causal = k_pos <= q_pos                              # (tq, tk), broadcast over rep
        s = jnp.where(causal[None], s.reshape(rep, tq, tk), -1e30).reshape(rep * tq, tk)

        m_prev = m_sc[...]
        m_new = jnp.maximum(m_prev, jnp.max(s, axis=-1, keepdims=True))
        alpha = jnp.exp(m_prev - m_new)
        p = jnp.exp(s - m_new)
        l_sc[...] = alpha * l_sc[...] + jnp.sum(p, axis=-1, keepdims=True)
        acc_sc[...] = alpha * acc_sc[...] + jnp.dot(p.astype(compute_dtype), v,
                                                    preferred_element_type=jnp.float32)
        m_sc[...] = m_new

    @pl.when(ki == pl.num_programs(2) - 1)
    def _finalize():
        inv = _reciprocal(l_sc[...])
        o_ref[...] = (acc_sc[...] * inv).reshape(o_ref.shape).astype(o_ref.dtype)


def _out_proj_residual_kernel(x_ref, w_ref, r_ref, o_ref, acc_ref):
    # K reduction runs head-wise over the [H, S, D] attention output (no relayout needed).
    @pl.when(pl.program_id(2) == 0)
    def _init():
        acc_ref[...] = jnp.zeros_like(acc_ref)

    acc_ref[...] += jnp.dot(x_ref[0], w_ref[...], preferred_element_type=jnp.float32)

    @pl.when(pl.program_id(2) == pl.num_programs(2) - 1)
    def _store():
        o_ref[...] = (acc_ref[...] + r_ref[...].astype(jnp.float32)).astype(o_ref.dtype)


# ---------------------------------------------------------------------------
# wrappers (pallas_call with proper BlockSpecs / grids)
# ---------------------------------------------------------------------------
def rmsnorm(x, w, eps, out_dtype=None):
    S, H = x.shape
    out_dtype = out_dtype or x.dtype
    tm = _row_tile(S, 3 * H)
    row_spec = pl.BlockSpec((tm, H), lambda i: (i, 0))
    return pl.pallas_call(
        functools.partial(_rmsnorm_kernel, eps),
        grid=(S // tm,),
        in_specs=[row_spec, pl.BlockSpec((1, H), lambda i: (0, 0))],
        out_specs=row_spec,
        out_shape=jax.ShapeDtypeStruct((S, H), out_dtype),
        compiler_params=_compiler_params(("parallel",)),
    )(x, w.reshape(1, -1))


def fused_add_rmsnorm(x, res, w, eps, out_dtype=None):
    S, H = x.shape
    out_dtype = out_dtype or x.dtype
    tm = _row_tile(S, 5 * H)
    row_spec = pl.BlockSpec((tm, H), lambda i: (i, 0))
    return pl.pallas_call(
        functools.partial(_fused_add_rmsnorm_kernel, eps),
        grid=(S // tm,),
        in_specs=[row_spec, row_spec, pl.BlockSpec((1, H), lambda i: (0, 0))],
        out_specs=(row_spec, row_spec),
        out_shape=(jax.ShapeDtypeStruct((S, H), out_dtype),
                   jax.ShapeDtypeStruct((S, H), jnp.float32)),
        compiler_params=_compiler_params(("parallel",)),
    )(x, res, w.reshape(1, -1))


def matmul(x, w, out_dtype):
    M, K = x.shape
    K2, N = w.shape
    assert K == K2
    tm, tn, tk = _mm_tiles(M, K, N)
    bytes_io = (x.size * x.dtype.itemsize + w.size * w.dtype.itemsize
                + M * N * np.dtype(out_dtype).itemsize)
    return pl.pallas_call(
        _matmul_kernel,
        grid=(M // tm, N // tn, K // tk),
        in_specs=[pl.BlockSpec((tm, tk), lambda i, j, k: (i, k)),
                  pl.BlockSpec((tk, tn), lambda i, j, k: (k, j))],
        out_specs=pl.BlockSpec((tm, tn), lambda i, j, k: (i, j)),
        out_shape=jax.ShapeDtypeStruct((M, N), out_dtype),
        scratch_shapes=[pltpu.VMEM((tm, tn), jnp.float32)],
        compiler_params=_compiler_params(("parallel", "parallel", "arbitrary")),
        cost_estimate=_cost_estimate(2 * M * N * K, bytes_io),
    )(x, w)


def gate_up_silu(x, w_gate, w_up, out_dtype):
    """out = silu(x @ w_gate) * (x @ w_up)   (SiluAndMul fused into the matmul epilogue)."""
    M, K = x.shape
    K2, N = w_gate.shape
    assert K == K2 and w_up.shape == (K, N)
    tm, tn, tk = _mm_tiles(M, K, N)
    bytes_io = (x.size * x.dtype.itemsize + 2 * w_gate.size * w_gate.dtype.itemsize
                + M * N * np.dtype(out_dtype).itemsize)
    return pl.pallas_call(
        _gate_up_silu_kernel,
        grid=(M // tm, N // tn, K // tk),
        in_specs=[pl.BlockSpec((tm, tk), lambda i, j, k: (i, k)),
                  pl.BlockSpec((tk, tn), lambda i, j, k: (k, j)),
                  pl.BlockSpec((tk, tn), lambda i, j, k: (k, j))],
        out_specs=pl.BlockSpec((tm, tn), lambda i, j, k: (i, j)),
        out_shape=jax.ShapeDtypeStruct((M, N), out_dtype),
        scratch_shapes=[pltpu.VMEM((tm, tn), jnp.float32),
                        pltpu.VMEM((tm, tn), jnp.float32)],
        compiler_params=_compiler_params(("parallel", "parallel", "arbitrary")),
        cost_estimate=_cost_estimate(4 * M * N * K, bytes_io),
    )(x, w_gate, w_up)


def qkv_split_rope(qkv, cos, sin_signed, H, KVH, D, out_dtype):
    """Split the qkv matmul output and apply RoPE once, emitting q:[H,S,D], k/v:[KVH,S,D]."""
    S, W = qkv.shape
    assert W == (H + 2 * KVH) * D
    tm = _row_tile(S, 4 * W, elem_bytes=2)
    return pl.pallas_call(
        functools.partial(_qkv_split_rope_kernel, H, KVH, D),
        grid=(S // tm,),
        in_specs=[pl.BlockSpec((tm, W), lambda i: (i, 0)),
                  pl.BlockSpec((tm, D), lambda i: (i, 0)),
                  pl.BlockSpec((tm, D), lambda i: (i, 0))],
        out_specs=(pl.BlockSpec((H, tm, D), lambda i: (0, i, 0)),
                   pl.BlockSpec((KVH, tm, D), lambda i: (0, i, 0)),
                   pl.BlockSpec((KVH, tm, D), lambda i: (0, i, 0))),
        out_shape=(jax.ShapeDtypeStruct((H, S, D), out_dtype),
                   jax.ShapeDtypeStruct((KVH, S, D), out_dtype),
                   jax.ShapeDtypeStruct((KVH, S, D), out_dtype)),
        compiler_params=_compiler_params(("parallel",)),
    )(qkv, cos, sin_signed)


def flash_attention(q, k, v, scale, out_dtype, compute_dtype=jnp.bfloat16):
    """Causal flash attention, GQA merged into the matmul M dim.

    q: [H, S, D]   k, v: [KVH, S, D]   -> [H, S, D]
    """
    H, S, D = q.shape
    KVH = k.shape[0]
    rep = H // KVH
    tq = _pick_tile(S, 256, 16)
    tk = _pick_tile(S, 256, 16)

    def kv_map(g, i, j):
        # Clamp so causally-skipped kv tiles alias the previous block -> no HBM fetch.
        return (g, jnp.minimum(j, (i * tq + tq - 1) // tk), 0)

    flops = 2 * H * S * S * D            # ~half of dense 4*H*S*S*D (causal)
    bytes_io = ((q.size + k.size + v.size) * q.dtype.itemsize
                + H * S * D * np.dtype(out_dtype).itemsize)
    kernel = functools.partial(_flash_attn_kernel, scale, rep, tq, tk, compute_dtype)
    return pl.pallas_call(
        kernel,
        grid=(KVH, S // tq, S // tk),
        in_specs=[
            pl.BlockSpec((rep, tq, D), lambda g, i, j: (g, i, 0)),   # q heads of kv-group g
            pl.BlockSpec((1, tk, D), kv_map),                        # k
            pl.BlockSpec((1, tk, D), kv_map),                        # v
        ],
        out_specs=pl.BlockSpec((rep, tq, D), lambda g, i, j: (g, i, 0)),
        out_shape=jax.ShapeDtypeStruct((H, S, D), out_dtype),
        scratch_shapes=[
            pltpu.VMEM((rep * tq, D), compute_dtype),   # scaled q (rep merged into M)
            pltpu.VMEM((rep * tq, 1), jnp.float32),     # running max
            pltpu.VMEM((rep * tq, 1), jnp.float32),     # running sum
            pltpu.VMEM((rep * tq, D), jnp.float32),     # output accumulator
        ],
        compiler_params=_compiler_params(("parallel", "parallel", "arbitrary")),
        cost_estimate=_cost_estimate(flops, bytes_io, transcendentals=H * S * S // 2),
    )(q, k, v)


def out_proj_residual(attn, w, residual, out_dtype):
    """out = concat_heads(attn) @ w + residual, consuming attn directly in [H, S, D] layout."""
    H, S, D = attn.shape
    HD, N = w.shape
    assert HD == H * D and residual.shape == (S, N)
    tm = _pick_tile(S, 512 if _BIG_VMEM else 256, 16)
    tn = _pick_tile(N, 512, 128)
    bytes_io = (attn.size * attn.dtype.itemsize + w.size * w.dtype.itemsize
                + residual.size * residual.dtype.itemsize
                + S * N * np.dtype(out_dtype).itemsize)
    return pl.pallas_call(
        _out_proj_residual_kernel,
        grid=(S // tm, N // tn, H),
        in_specs=[pl.BlockSpec((1, tm, D), lambda i, j, k: (k, i, 0)),   # head k of attn
                  pl.BlockSpec((D, tn), lambda i, j, k: (k, j)),         # weight rows of head k
                  pl.BlockSpec((tm, tn), lambda i, j, k: (i, j))],       # residual
        out_specs=pl.BlockSpec((tm, tn), lambda i, j, k: (i, j)),
        out_shape=jax.ShapeDtypeStruct((S, N), out_dtype),
        scratch_shapes=[pltpu.VMEM((tm, tn), jnp.float32)],
        compiler_params=_compiler_params(("parallel", "parallel", "arbitrary")),
        cost_estimate=_cost_estimate(2 * S * N * HD, bytes_io),
    )(attn, w, residual)


# ---------------------------------------------------------------------------
# Config / params / layer glue
# ---------------------------------------------------------------------------
class Config:
    hidden_size = 32
    num_attention_heads = 4
    num_key_value_heads = 2
    intermediate_size = 64
    layer_norm_epsilon = 1e-5
    rope_theta = 10000.0
    activation_function = "silu"


def init_params(key, cfg):
    hd = cfg.hidden_size // cfg.num_attention_heads
    q_size = cfg.num_attention_heads * hd
    kv_size = cfg.num_key_value_heads * hd
    ks = jax.random.split(key, 4)

    def w(k, shape):
        return jax.random.normal(k, shape, jnp.float32) * 0.05

    return dict(
        ln_1=jnp.ones((cfg.hidden_size,), jnp.float32),
        ln_2=jnp.ones((cfg.hidden_size,), jnp.float32),
        qkv_w=w(ks[0], (cfg.hidden_size, q_size + 2 * kv_size)),
        out_w=w(ks[1], (q_size, cfg.hidden_size)),
        gate_up_w=w(ks[2], (cfg.hidden_size, 2 * cfg.intermediate_size)),
        c_proj_w=w(ks[3], (cfg.intermediate_size, cfg.hidden_size)),
    )


def prepare_weights(params, cfg, compute_dtype=jnp.bfloat16):
    """One-time weight prep: bf16 cast + gate/up split (done at load time, not per call)."""
    inter = cfg.intermediate_size
    return dict(
        ln_1=params["ln_1"].astype(jnp.float32),
        ln_2=params["ln_2"].astype(jnp.float32),
        qkv_w=params["qkv_w"].astype(compute_dtype),
        out_w=params["out_w"].astype(compute_dtype),
        gate_w=params["gate_up_w"][:, :inter].astype(compute_dtype),
        up_w=params["gate_up_w"][:, inter:].astype(compute_dtype),
        c_proj_w=params["c_proj_w"].astype(compute_dtype),
    )
    # TODO(synk): on v7x, projection weights could be stored fp8 with per-channel scales.


def rope_tables(positions, head_dim, theta):
    half = head_dim // 2
    inv_freq = 1.0 / (theta ** (jnp.arange(0, half, dtype=jnp.float32) * 2.0 / head_dim))
    freqs = positions.astype(jnp.float32)[:, None] * inv_freq[None, :]   # [S, half]
    cos = jnp.cos(freqs)
    sin = jnp.sin(freqs)
    cos_full = jnp.concatenate([cos, cos], axis=-1)       # [S, D]
    sin_signed = jnp.concatenate([-sin, sin], axis=-1)    # sign-folded for rotate-half
    return cos_full, sin_signed


def exaone_decoder_layer(positions, hidden_states, residual, weights, cfg,
                         compute_dtype=jnp.bfloat16):
    eps = cfg.layer_norm_epsilon
    H = cfg.num_attention_heads
    KVH = cfg.num_key_value_heads
    D = cfg.hidden_size // H
    S = hidden_states.shape[0]

    # Pad S to a multiple of 16 (bf16 sublane packing) so every kernel gets clean tiles.
    S_pad = ((S + 15) // 16) * 16
    pad = S_pad - S
    if pad:
        hidden_states = jnp.pad(hidden_states, ((0, pad), (0, 0)))
        positions = jnp.pad(positions, (0, pad))
        if residual is not None:
            residual = jnp.pad(residual, ((0, pad), (0, 0)))

    # ln_1 (fused residual add + norm when residual is present); emits bf16 for the MXU.
    if residual is None:
        residual_p = hidden_states.astype(jnp.float32)
        h = rmsnorm(hidden_states, weights["ln_1"], eps, out_dtype=compute_dtype)
    else:
        h, residual_p = fused_add_rmsnorm(hidden_states, residual, weights["ln_1"], eps,
                                          out_dtype=compute_dtype)

    # ---- attention ----
    qkv = matmul(h, weights["qkv_w"], out_dtype=compute_dtype)           # [S, (H+2KVH)*D]
    cos, sin_signed = rope_tables(positions, D, cfg.rope_theta)
    q, k, v = qkv_split_rope(qkv, cos, sin_signed, H, KVH, D,
                             out_dtype=compute_dtype)                     # [H|KVH, S, D]
    attn = flash_attention(q, k, v, D ** -0.5, out_dtype=compute_dtype,
                           compute_dtype=compute_dtype)                   # [H, S, D]

    # out_proj (head-wise K reduction over [H,S,D]) with ln_2's residual add fused -> f32 stream.
    residual_p = out_proj_residual(attn, weights["out_w"], residual_p, out_dtype=jnp.float32)

    # ln_2 (the add already happened above).
    h = rmsnorm(residual_p, weights["ln_2"], eps, out_dtype=compute_dtype)

    # ---- MLP (SiluAndMul fused into the gate_up matmul epilogue) ----
    act = gate_up_silu(h, weights["gate_w"], weights["up_w"], out_dtype=compute_dtype)
    h = matmul(act, weights["c_proj_w"], out_dtype=jnp.float32)

    if pad:
        h = h[:S]
        residual_p = residual_p[:S]
    return h, residual_p


# ---------------------------------------------------------------------------
# Pure-JAX (f32) reference for a numerical sanity check
# ---------------------------------------------------------------------------
def ref_layer(positions, x, residual, params, cfg):
    eps = cfg.layer_norm_epsilon
    H = cfg.num_attention_heads
    KVH = cfg.num_key_value_heads
    D = cfg.hidden_size // H
    S = x.shape[0]

    def rms(v, w):
        var = jnp.mean(v * v, -1, keepdims=True)
        return v * lax.rsqrt(var + eps) * w

    if residual is None:
        residual = x
        h = rms(x, params["ln_1"])
    else:
        s = x + residual
        residual = s
        h = rms(s, params["ln_1"])

    qkv = h @ params["qkv_w"]
    q_size, kv_size = H * D, KVH * D
    q = qkv[:, :q_size].reshape(S, H, D)
    k = qkv[:, q_size:q_size + kv_size].reshape(S, KVH, D)
    v = qkv[:, q_size + kv_size:].reshape(S, KVH, D)
    cos, sin_signed = rope_tables(positions, D, cfg.rope_theta)
    half = D // 2

    def rope(t):
        rot = jnp.concatenate([t[..., half:], t[..., :half]], axis=-1)
        return t * cos[:, None, :] + rot * sin_signed[:, None, :]

    q, k = rope(q), rope(k)
    rep = H // KVH
    k = jnp.repeat(k, rep, axis=1)
    v = jnp.repeat(v, rep, axis=1)
    scale = D ** -0.5
    s = jnp.einsum("qhd,khd->hqk", q, k) * scale
    mask = jnp.tril(jnp.ones((S, S), bool))
    s = jnp.where(mask[None], s, -1e30)
    p = jax.nn.softmax(s, axis=-1)
    o = jnp.einsum("hqk,khd->qhd", p, v).reshape(S, H * D)
    h = o @ params["out_w"]

    s2 = h + residual
    residual = s2
    h = rms(s2, params["ln_2"])
    gu = h @ params["gate_up_w"]
    inter = cfg.intermediate_size
    act = jax.nn.silu(gu[:, :inter]) * gu[:, inter:]
    h = act @ params["c_proj_w"]
    return h, residual


if __name__ == "__main__":
    cfg = Config()
    key = jax.random.PRNGKey(0)
    kp, kx = jax.random.split(key)
    params = init_params(kp, cfg)
    weights = prepare_weights(params, cfg)   # bf16 cast + gate/up split done once

    S = 8
    positions = jnp.arange(S, dtype=jnp.int32)
    hidden = jax.random.normal(kx, (S, cfg.hidden_size), jnp.float32)

    # first call: residual is None
    out, res = exaone_decoder_layer(positions, hidden, None, weights, cfg)
    out = jax.block_until_ready(out)
    res = jax.block_until_ready(res)

    ref_out, ref_res = ref_layer(positions, hidden, None, params, cfg)
    np.testing.assert_allclose(np.asarray(out), np.asarray(ref_out), atol=2e-2, rtol=2e-2)
    np.testing.assert_allclose(np.asarray(res), np.asarray(ref_res), atol=2e-2, rtol=2e-2)

    # second call: exercises the fused residual-add + RMSNorm path
    out2, res2 = exaone_decoder_layer(positions, out, res, weights, cfg)
    out2 = jax.block_until_ready(out2)
    res2 = jax.block_until_ready(res2)
    ref_out2, ref_res2 = ref_layer(positions, out, res, params, cfg)
    np.testing.assert_allclose(np.asarray(out2), np.asarray(ref_out2), atol=2e-2, rtol=2e-2)
    np.testing.assert_allclose(np.asarray(res2), np.asarray(ref_res2), atol=2e-2, rtol=2e-2)

    print("KERNEL_OK")
</pallas_src>

<mosaic_0001>
module attributes {stable_mosaic.version = 11 : i64} {
  func.func @_rmsnorm_kernel(%arg0: i32, %arg1: memref<16x32xf32, #tpu.memory_space<vmem>>, %arg2: memref<1x32xf32, #tpu.memory_space<vmem>>, %arg3: memref<16x32xbf16, #tpu.memory_space<vmem>>) attributes {dimension_semantics = [#tpu.dimension_semantics<parallel>], iteration_bounds = array<i64: 1>, scalar_prefetch = 0 : i64, scratch_operands = 0 : i64, tpu.core_type = #tpu.core_type<tc>, window_params = [{transform_indices = @transform_0, window_bounds = array<i64: 16, 32>}, {pipeline_mode = #tpu.pipeline_mode<synchronous>, transform_indices = @transform_1, window_bounds = array<i64: 1, 32>}, {transform_indices = @transform_2, window_bounds = array<i64: 16, 32>}]} {
    %c0 = arith.constant 0 : index
    %c0_0 = arith.constant 0 : index
    %0 = vector.load %arg1[%c0, %c0_0] : memref<16x32xf32, #tpu.memory_space<vmem>>, vector<16x32xf32>
    %1 = arith.mulf %0, %0 : vector<16x32xf32>
    %cst = arith.constant dense<0.000000e+00> : vector<16xf32>
    %2 = vector.multi_reduction <add>, %1, %cst [1] : vector<16x32xf32> to vector<16xf32>
    %3 = vector.shape_cast %2 : vector<16xf32> to vector<16x1xf32>
    %cst_1 = arith.constant 3.200000e+01 : f32
    %4 = vector.broadcast %cst_1 : f32 to vector<16x1xf32>
    %5 = arith.divf %3, %4 : vector<16x1xf32>
    %cst_2 = arith.constant 9.99999974E-6 : f32
    %6 = vector.broadcast %cst_2 : f32 to vector<16x1xf32>
    %7 = arith.addf %5, %6 : vector<16x1xf32>
    %8 = math.rsqrt %7 : vector<16x1xf32>
    %9 = vector.broadcast %8 : vector<16x1xf32> to vector<16x32xf32>
    %10 = arith.mulf %0, %9 : vector<16x32xf32>
    %c0_3 = arith.constant 0 : index
    %c0_4 = arith.constant 0 : index
    %11 = vector.load %arg2[%c0_3, %c0_4] : memref<1x32xf32, #tpu.memory_space<vmem>>, vector<1x32xf32>
    %12 = vector.broadcast %11 : vector<1x32xf32> to vector<16x32xf32>
    %13 = arith.mulf %10, %12 : vector<16x32xf32>
    %14 = arith.truncf %13 : vector<16x32xf32> to vector<16x32xbf16>
    %c0_5 = arith.constant 0 : index
    %c0_6 = arith.constant 0 : index
    %15 = vector.load %arg3[%c0_5, %c0_6] : memref<16x32xbf16, #tpu.memory_space<vmem>>, vector<16x32xbf16>
    tpu.vector_store %arg3[%c0_5, %c0_6], %14 {strides = array<i32>} : memref<16x32xbf16, #tpu.memory_space<vmem>>, vector<16x32xbf16>,
    return
  }
  func.func @transform_0(%arg0: i32) -> (i32, i32) {
    %c0_i32 = arith.constant 0 : i32
    %c0_i32_0 = arith.constant 0 : i32
    return %arg0, %c0_i32 : i32, i32
  }
  func.func @transform_1(%arg0: i32) -> (i32, i32) {
    %c0_i32 = arith.constant 0 : i32
    %c0_i32_0 = arith.constant 0 : i32
    %c0_i32_1 = arith.constant 0 : i32
    return %c0_i32, %c0_i32_0 : i32, i32
  }
  func.func @transform_2(%arg0: i32) -> (i32, i32) {
    %c0_i32 = arith.constant 0 : i32
    %c0_i32_0 = arith.constant 0 : i32
    return %arg0, %c0_i32 : i32, i32
  }
}

</mosaic_0001>

<llo_original>
// kernel: tpu_custom_call.1
$region0: #{tpu_custom_call.1}
  #allocation0 [shape = 'u32[]', space=smem, size = 0x4, offset = 0x4, fixed_abs, tag = 'smem constant byte address 0x4 - core index']
  #allocation1 [shape = 'u32[72,128]{1,0:T(1,128)}', space=vmem, size = 0x9000, scoped, tag = 'internal scratch']
  %s0 = inlined_call_operand.hbm [shape: f32[16,32], index: 0, kind: input, shape index: {}]
  %s1 = inlined_call_operand.hbm [shape: f32[1,32], index: 1, kind: input, shape index: {}]
  %s2 = inlined_call_operand.hbm [shape: bf16[16,32], index: 2, kind: output, shape index: {}]
  %s3 = sld [smem:[#allocation0]]
  $region26: #{tpu_custom_call.1} parent=0
    _
  %s5 = ssub.s32 1, %s3
  %s6 = scalar_select 0, %s5, %s3
  $region1: #{tpu_custom_call.1} parent=0
    #allocation2 [shape = 'u8[8192]{0}', space=vmem, size = 0x2000, scoped, tag = 'input window, operand 0, single buffered']
    #allocation3 [shape = 's32[1]{0}', space=sflag, size = 0x4, scoped, tag = 'scoped memory for tpu_custom_call.1']
    #allocation4 [shape = 's32[1]{0}', space=sflag, size = 0x4, scoped, tag = 'scoped memory for tpu_custom_call.1']
    #allocation5 [shape = 'u8[512]{0}', space=vmem, size = 0x400, scoped, tag = 'input window, operand 1, single buffered']
    #allocation6 [shape = 's32[1]{0}', space=sflag, size = 0x4, scoped, tag = 'scoped memory for tpu_custom_call.1']
    #allocation7 [shape = 'u8[4096]{0}', space=vmem, size = 0x1000, scoped, tag = 'output window, operand 0, single buffered']
    %7 = vsyncpa [#allocation3], 0
    %8 = vsyncpa [#allocation6], 0
    %9 = vsyncpa [#allocation4], 0
    // Predicated region
    $region2: #{tpu_custom_call.1} parent=1 // pred_check
      _
    $region3: #{tpu_custom_call.1} parent=1 // pred_check_branch
      %11 = sbr.rel (0) target = $region5
    $region4: #{tpu_custom_call.1} parent=1 // pred_region
      %13 = vsyncadd [#allocation3], 0
      %s14 = sshll.u32 %s0, 4
      %s15 = int_to_ptr.hbm [resolvable:$true] %s14
      %s16 = sshll.u32 [#allocation2], 4
      %s17 = int_to_ptr.vmem [resolvable:$true] %s16
      %22 = dma.hbm_to_vmem [thread:$0]  %s15, 256, %s17, [#allocation3], 128, 128, 8
    $region5: #{tpu_custom_call.1} parent=1 // pred_fallthru
      _
    // Predicated region
    $region6: #{tpu_custom_call.1} parent=1 // pred_check
      _
    $region7: #{tpu_custom_call.1} parent=1 // pred_check_branch
      %24 = sbr.rel (0) target = $region9
    $region8: #{tpu_custom_call.1} parent=1 // pred_region
      %26 = vsyncadd [#allocation6], 0
      %s28 = sshll.u32 %s1, 4
      %s29 = int_to_ptr.hbm [resolvable:$true] %s28
      %s30 = sshll.u32 [#allocation5], 4
      %s31 = int_to_ptr.vmem [resolvable:$true] %s30
      %33 = dma.hbm_to_vmem [thread:$0]  %s29, 16, %s31, [#allocation6]
    $region9: #{tpu_custom_call.1} parent=1 // pred_fallthru
      _
    // Predicated region
    $region10: #{tpu_custom_call.1} parent=1 // pred_check
      _
    $region11: #{tpu_custom_call.1} parent=1 // pred_check_branch
      %35 = sbr.rel (0) target = $region13
    $region12: #{tpu_custom_call.1} parent=1 // pred_region
      %37 = dma.done [#allocation3], 256
    $region13: #{tpu_custom_call.1} parent=1 // pred_fallthru
      _
    // Predicated region
    $region14: #{tpu_custom_call.1} parent=1 // pred_check
      _
    $region15: #{tpu_custom_call.1} parent=1 // pred_check_branch
      %39 = sbr.rel (0) target = $region17
    $region16: #{tpu_custom_call.1} parent=1 // pred_region
      %41 = dma.done [#allocation6], 16
    $region17: #{tpu_custom_call.1} parent=1 // pred_fallthru
      _
    %v42 = vld [vmem:[#allocation2] sm:$0xff]
    %v43 = vld [vmem:[#allocation2 + $0x8] sm:$0xff]
    %v44 = vmul.f32 %v42, %v42
    %v45 = vmul.f32 %v43, %v43
    %vm46 = vcmask 261120
    %v47 = vsel %vm46, %v44, 0.0
    %48 = vadd.xlane.f32.xlu0 %v47
    %v49 = vpop.xlane.xlu0 %48
    %v50 = vsel %vm46, %v45, 0.0
    %51 = vadd.xlane.f32.xlu0 %v50
    %v52 = vpop.xlane.xlu0 %51
    %v53 = vrcp.pop 32.0
    %v54 = vmul.f32 32.0, %v53
    %v55 = vsub.f32 1.0, %v54
    %v56 = vmul.f32 %v53, %v55
    %v57 = vadd.f32 %v53, %v56
    %vm58 = vweird.f32 %v53
    %v59 = vsel %vm58, %v53, %v57
    %v60 = vmul.f32 %v49, %v59
    %v61 = vmul.f32 %v52, %v59
    %v62 = vadd.f32 %v60, 1e-05
    %v63 = vadd.f32 %v61, 1e-05
    %v64 = vrsqrt.pop %v62
    %v65 = vmul.f32 %v64, %v62
    %v66 = vmul.f32 %v65, %v64
    %v67 = vmul.f32 0.5, %v66
    %v68 = vsub.f32 1.5, %v67
    %v69 = vmul.f32 %v64, %v68
    %vm70 = vweird.f32 %v62
    %vm71 = vweird.f32 %v64
    %vm72 = vmor %vm70, %vm71
    %v73 = vsel %vm72, %v64, %v69
    %v74 = vrsqrt.pop %v63
    %v75 = vmul.f32 %v74, %v63
    %v76 = vmul.f32 %v75, %v74
    %v77 = vmul.f32 0.5, %v76
    %v78 = vsub.f32 1.5, %v77
    %v79 = vmul.f32 %v74, %v78
    %vm80 = vweird.f32 %v63
    %vm81 = vweird.f32 %v74
    %vm82 = vmor %vm80, %vm81
    %v83 = vsel %vm82, %v74, %v79
    %v84 = vmul.f32 %v42, %v73
    %v85 = vmul.f32 %v43, %v83
    %v86 = vld [vmem:[#allocation5] sm:$0x1]
    %v88 = vperm.slane %v86, 0
    %v90 = vmul.f32 %v84, %v88
    %v91 = vmul.f32 %v85, %v88
    %v92 = vpack.c.bf16 %v90, %v90
    %v93 = vpack.c.bf16 %v91, %v91
    %vm94 = vcmask 257024
    %95 = vst.msk [vmem:[#allocation7] sm:$0xf] %vm94, %v92
    %96 = vst.msk [vmem:[#allocation7 + $0x4] sm:$0xf] %vm94, %v93
    // Predicated region
    $region18: #{tpu_custom_call.1} parent=1 // pred_check
      _
    $region19: #{tpu_custom_call.1} parent=1 // pred_check_branch
      %98 = sbr.rel (0) target = $region21
    $region20: #{tpu_custom_call.1} parent=1 // pred_region
      %100 = vsyncadd [#allocation4], 0
      %s101 = sshll.u32 [#allocation7], 4
      %s102 = int_to_ptr.vmem [resolvable:$true] %s101
      %s103 = sshll.u32 %s2, 4
      %s104 = int_to_ptr.hbm [resolvable:$true] %s103
      %109 = dma.vmem_to_hbm [thread:$0]  %s102, 128, %s104, [#allocation4], 64, 64, 4
    $region21: #{tpu_custom_call.1} parent=1 // pred_fallthru
      _
    // Predicated region
    $region22: #{tpu_custom_call.1} parent=1 // pred_check
      _
    $region23: #{tpu_custom_call.1} parent=1 // pred_check_branch
      %111 = sbr.rel (0) target = $region25
    $region24: #{tpu_custom_call.1} parent=1 // pred_region
      %113 = dma.done [#allocation4], 128
    $region25: #{tpu_custom_call.1} parent=1 // pred_fallthru
      _
    %114 = vsyncpa [#allocation3], 1
    %115 = vsyncpa [#allocation6], 1
    %116 = vsyncpa [#allocation4], 1

</llo_original>
